<compile_context>
chip_gen: v7x
topology: tpu7x:2x2x1
jax: 0.10.0
libtpu: 0.0.40
codegen_flags: <defaults>
</compile_context>

<pallas_src>
import numpy as np
import jax
import jax.numpy as jnp
from jax.experimental import pallas as pl
from jax.experimental.pallas import tpu as pltpu


def _round_up(v, m):
    return ((v + m - 1) // m) * m


def _triplet_loss_kernel(idx_ref, x_ref, loss_ref):
    x = x_ref[...]                                   # (N_pad, d_pad) f32 features
    idx = idx_ref[...]                               # (T_pad, 3) int32, -1 padded
    t_pad = idx.shape[0]
    n_pad = x.shape[0]

    a_idx = idx[:, 0:1]                              # (T_pad, 1) anchor index i
    p_idx = idx[:, 1:2]                              # (T_pad, 1) positive index j
    n_idx = idx[:, 2:3]                              # (T_pad, 1) negative index k

    col = jax.lax.broadcasted_iota(jnp.int32, (t_pad, n_pad), 1)
    a_oh = (col == a_idx).astype(jnp.float32)        # (T_pad, N_pad) one-hot rows
    p_oh = (col == p_idx).astype(jnp.float32)
    n_oh = (col == n_idx).astype(jnp.float32)

    # Row gathers expressed as MXU matmuls (exact: one-hots are 0/1).
    xa = jnp.dot(a_oh, x, preferred_element_type=jnp.float32)   # (T_pad, d_pad)
    xp = jnp.dot(p_oh, x, preferred_element_type=jnp.float32)
    xn = jnp.dot(n_oh, x, preferred_element_type=jnp.float32)

    dp = xa - xp
    dn = xa - xn
    d_pos = jnp.sum(dp * dp, axis=1, keepdims=True)  # (T_pad, 1) = ||x_i - x_j||^2
    d_neg = jnp.sum(dn * dn, axis=1, keepdims=True)  # (T_pad, 1) = ||x_i - x_k||^2

    # Stable softplus(z) = log(1 + exp(z)); overflow-free for large |z|.
    z = d_pos - d_neg
    per_trip = jnp.maximum(z, 0.0) + jnp.log(1.0 + jnp.exp(-jnp.abs(z)))

    valid = (a_idx >= 0).astype(jnp.float32)         # 1.0 real triplet, 0.0 padding
    per_trip = per_trip * valid
    count = jnp.sum(valid)                           # == triplet_count

    loss_ref[0] = jnp.sum(per_trip) / count


def random_triplets(size, seed=0):
    """Same triplet construction as MyTripletLossFunc.random_triplets, with a
    deterministic RNG instead of global np.random state."""
    rng = np.random.RandomState(seed)
    labels = list(range(size // 2)) + list(range(size // 2))
    triplets = []
    for i in range(len(labels)):
        triplets_i = []
        for j in range(len(labels)):
            if labels[i] == labels[j] and i != j:
                for k in range(len(labels)):
                    if labels[i] != labels[k]:
                        triplets_i.append([i, j, k])
        rng.shuffle(triplets_i)
        triplets += triplets_i[:3]
    assert triplets and len(triplets) < 2000
    return triplets


def triplet_loss_pallas(x, triplets):
    """x: (N, d) float32 features. Returns loss of shape (1,) float32."""
    N, d = x.shape
    T = len(triplets)

    T_pad = max(8, _round_up(T, 8))       # sublane multiple for the triplet axis
    N_pad = max(8, _round_up(N, 8))       # sublane multiple for the sample axis
    d_pad = max(128, _round_up(d, 128))   # lane-dense feature axis

    # Tiny int32 index payload (12*T bytes) instead of dense (T, N) one-hots.
    idx_np = np.full((T_pad, 3), -1, dtype=np.int32)
    idx_np[:T, :] = np.asarray(triplets, dtype=np.int32)
    idx = jnp.asarray(idx_np)

    # Zero-pad features; padded rows/cols never selected / contribute 0.
    x_p = jnp.zeros((N_pad, d_pad), jnp.float32).at[:N, :d].set(
        x.astype(jnp.float32))

    loss = pl.pallas_call(
        _triplet_loss_kernel,
        out_shape=jax.ShapeDtypeStruct((1,), jnp.float32),
        grid=(1,),
        in_specs=[
            pl.BlockSpec((T_pad, 3), lambda i: (0, 0)),
            pl.BlockSpec((N_pad, d_pad), lambda i: (0, 0)),
        ],
        out_specs=pl.BlockSpec(memory_space=pltpu.MemorySpace.SMEM),
        compiler_params=pltpu.CompilerParams(
            dimension_semantics=("arbitrary",)),
    )(idx, x_p)
    return loss


def reference_loss(x_np, triplets):
    """float64 numpy reference matching MyTripletLossFunc.forward."""
    xn = (x_np ** 2).sum(1)
    dist = xn[:, None] + xn[None, :] - 2.0 * (x_np @ x_np.T)
    dist = np.clip(dist, 0.0, np.inf)
    loss = 0.0
    for i, j, k in triplets:
        loss += np.log1p(np.exp(dist[i, j] - dist[i, k]))
    return np.float32(loss / len(triplets))


if __name__ == "__main__":
    key = jax.random.PRNGKey(0)
    N, d = 8, 32  # N samples (even: two copies of each label), d feature dim
    x = jax.random.normal(key, (N, d), dtype=jnp.float32)

    # TODO(synk): triplet sampling uses host RNG (like the original CPU/numpy
    # path); it is not expressible inside the kernel and is done on the host.
    triplets = random_triplets(N, seed=0)

    loss = triplet_loss_pallas(x, triplets)
    loss = jax.block_until_ready(loss)

    ref = reference_loss(np.asarray(x, dtype=np.float64), triplets)
    assert loss.shape == (1,)
    assert np.allclose(np.asarray(loss)[0], ref, rtol=1e-4, atol=1e-5), (loss, ref)
    print("KERNEL_OK")
</pallas_src>

<mosaic_0001>
module attributes {stable_mosaic.version = 11 : i64} {
  func.func @_triplet_loss_kernel(%arg0: i32, %arg1: memref<24x3xi32, #tpu.memory_space<vmem>>, %arg2: memref<8x128xf32, #tpu.memory_space<vmem>>, %arg3: memref<1xf32, #tpu.memory_space<smem>>) attributes {dimension_semantics = [#tpu.dimension_semantics<arbitrary>], iteration_bounds = array<i64: 1>, scalar_prefetch = 0 : i64, scratch_operands = 0 : i64, tpu.core_type = #tpu.core_type<tc>, window_params = [{pipeline_mode = #tpu.pipeline_mode<synchronous>, transform_indices = @transform_0, window_bounds = array<i64: 24, 3>}, {pipeline_mode = #tpu.pipeline_mode<synchronous>, transform_indices = @transform_1, window_bounds = array<i64: 8, 128>}, {transform_indices = @transform_2, window_bounds = array<i64: 1>}]} {
    %c0 = arith.constant 0 : index
    %c0_0 = arith.constant 0 : index
    %0 = vector.load %arg2[%c0, %c0_0] : memref<8x128xf32, #tpu.memory_space<vmem>>, vector<8x128xf32>
    %c0_1 = arith.constant 0 : index
    %c0_2 = arith.constant 0 : index
    %1 = vector.load %arg1[%c0_1, %c0_2] : memref<24x3xi32, #tpu.memory_space<vmem>>, vector<24x3xi32>
    %2 = vector.extract_strided_slice %1 {offsets = [0, 0], sizes = [24, 1], strides = [1, 1]} : vector<24x3xi32> to vector<24x1xi32>
    %3 = vector.extract_strided_slice %1 {offsets = [0, 1], sizes = [24, 1], strides = [1, 1]} : vector<24x3xi32> to vector<24x1xi32>
    %4 = vector.extract_strided_slice %1 {offsets = [0, 2], sizes = [24, 1], strides = [1, 1]} : vector<24x3xi32> to vector<24x1xi32>
    %5 = tpu.iota {dimensions = array<i32: 1>} : vector<24x8xi32>
    %6 = vector.broadcast %2 : vector<24x1xi32> to vector<24x8xi32>
    %7 = arith.cmpi eq, %5, %6 : vector<24x8xi32>
    %8 = arith.extui %7 : vector<24x8xi1> to vector<24x8xi32>
    %9 = arith.sitofp %8 : vector<24x8xi32> to vector<24x8xf32>
    %10 = vector.broadcast %3 : vector<24x1xi32> to vector<24x8xi32>
    %11 = arith.cmpi eq, %5, %10 : vector<24x8xi32>
    %12 = arith.extui %11 : vector<24x8xi1> to vector<24x8xi32>
    %13 = arith.sitofp %12 : vector<24x8xi32> to vector<24x8xf32>
    %14 = vector.broadcast %4 : vector<24x1xi32> to vector<24x8xi32>
    %15 = arith.cmpi eq, %5, %14 : vector<24x8xi32>
    %16 = arith.extui %15 : vector<24x8xi1> to vector<24x8xi32>
    %17 = arith.sitofp %16 : vector<24x8xi32> to vector<24x8xf32>
    %cst = arith.constant dense<0.000000e+00> : vector<24x128xf32>
    %18 = tpu.matmul %9, %0, %cst {dimension_numbers = #tpu.dot_dimension_numbers<[1], [0], [0], [1], [0, 0, 1, 1], [], []>} : vector<24x8xf32>, vector<8x128xf32>, vector<24x128xf32> -> vector<24x128xf32>
    %cst_3 = arith.constant dense<0.000000e+00> : vector<24x128xf32>
    %19 = tpu.matmul %13, %0, %cst_3 {dimension_numbers = #tpu.dot_dimension_numbers<[1], [0], [0], [1], [0, 0, 1, 1], [], []>} : vector<24x8xf32>, vector<8x128xf32>, vector<24x128xf32> -> vector<24x128xf32>
    %cst_4 = arith.constant dense<0.000000e+00> : vector<24x128xf32>
    %20 = tpu.matmul %17, %0, %cst_4 {dimension_numbers = #tpu.dot_dimension_numbers<[1], [0], [0], [1], [0, 0, 1, 1], [], []>} : vector<24x8xf32>, vector<8x128xf32>, vector<24x128xf32> -> vector<24x128xf32>
    %21 = arith.subf %18, %19 : vector<24x128xf32>
    %22 = arith.subf %18, %20 : vector<24x128xf32>
    %23 = arith.mulf %21, %21 : vector<24x128xf32>
    %cst_5 = arith.constant dense<0.000000e+00> : vector<24xf32>
    %24 = vector.multi_reduction <add>, %23, %cst_5 [1] : vector<24x128xf32> to vector<24xf32>
    %25 = vector.shape_cast %24 : vector<24xf32> to vector<24x1xf32>
    %26 = arith.mulf %22, %22 : vector<24x128xf32>
    %cst_6 = arith.constant dense<0.000000e+00> : vector<24xf32>
    %27 = vector.multi_reduction <add>, %26, %cst_6 [1] : vector<24x128xf32> to vector<24xf32>
    %28 = vector.shape_cast %27 : vector<24xf32> to vector<24x1xf32>
    %29 = arith.subf %25, %28 : vector<24x1xf32>
    %cst_7 = arith.constant 0.000000e+00 : f32
    %30 = vector.broadcast %cst_7 : f32 to vector<24x1xf32>
    %31 = arith.maximumf %29, %30 : vector<24x1xf32>
    %32 = math.absf %29 : vector<24x1xf32>
    %cst_8 = arith.constant 0.000000e+00 : f32
    %33 = vector.broadcast %cst_8 : f32 to vector<24x1xf32>
    %34 = arith.subf %33, %32 : vector<24x1xf32>
    %35 = math.exp %34 : vector<24x1xf32>
    %cst_9 = arith.constant 1.000000e+00 : f32
    %36 = vector.broadcast %cst_9 : f32 to vector<24x1xf32>
    %37 = arith.addf %36, %35 : vector<24x1xf32>
    %38 = math.log %37 : vector<24x1xf32>
    %39 = arith.addf %31, %38 : vector<24x1xf32>
    %c0_i32 = arith.constant 0 : i32
    %40 = vector.broadcast %c0_i32 : i32 to vector<24x1xi32>
    %41 = arith.cmpi sge, %2, %40 : vector<24x1xi32>
    %42 = arith.extui %41 : vector<24x1xi1> to vector<24x1xi32>
    %43 = arith.sitofp %42 : vector<24x1xi32> to vector<24x1xf32>
    %44 = arith.mulf %39, %43 : vector<24x1xf32>
    %45 = vector.shape_cast %43 : vector<24x1xf32> to vector<1x24x1xf32>
    %cst_10 = arith.constant dense<0.000000e+00> : vector<1xf32>
    %46 = vector.multi_reduction <add>, %45, %cst_10 [1, 2] : vector<1x24x1xf32> to vector<1xf32>
    %47 = vector.shape_cast %46 : vector<1xf32> to vector<1x1x1xf32>
    %48 = vector.extract %47[0, 0, 0] : f32 from vector<1x1x1xf32>
    %49 = vector.shape_cast %44 : vector<24x1xf32> to vector<1x24x1xf32>
    %cst_11 = arith.constant dense<0.000000e+00> : vector<1xf32>
    %50 = vector.multi_reduction <add>, %49, %cst_11 [1, 2] : vector<1x24x1xf32> to vector<1xf32>
    %51 = vector.shape_cast %50 : vector<1xf32> to vector<1x1x1xf32>
    %52 = vector.extract %51[0, 0, 0] : f32 from vector<1x1x1xf32>
    %53 = arith.divf %52, %48 : f32
    %c0_12 = arith.constant 0 : index
    %54 = memref.load %arg3[%c0_12] : memref<1xf32, #tpu.memory_space<smem>>
    memref.store %53, %arg3[%c0_12] : memref<1xf32, #tpu.memory_space<smem>>
    return
  }
  func.func @transform_0(%arg0: i32) -> (i32, i32) {
    %c0_i32 = arith.constant 0 : i32
    %c0_i32_0 = arith.constant 0 : i32
    %c0_i32_1 = arith.constant 0 : i32
    return %c0_i32, %c0_i32_0 : i32, i32
  }
  func.func @transform_1(%arg0: i32) -> (i32, i32) {
    %c0_i32 = arith.constant 0 : i32
    %c0_i32_0 = arith.constant 0 : i32
    %c0_i32_1 = arith.constant 0 : i32
    return %c0_i32, %c0_i32_0 : i32, i32
  }
  func.func @transform_2(%arg0: i32) -> i32 {
    %c0_i32 = arith.constant 0 : i32
    %c0_i32_0 = arith.constant 0 : i32
    return %c0_i32 : i32
  }
}

</mosaic_0001>

<llo_original>
// kernel: tpu_custom_call.1
$region0: #{tpu_custom_call.1}
  #allocation0 [shape = 'u32[]', space=smem, size = 0x4, offset = 0x4, fixed_abs, tag = 'smem constant byte address 0x4 - core index']
  #allocation1 [shape = 'u32[144,128]{1,0:T(1,128)}', space=vmem, size = 0x12000, scoped, tag = 'internal scratch']
  %s0 = inlined_call_operand.vmem [shape: s32[24,3], index: 0, kind: input, shape index: {}]
  %s1 = inlined_call_operand.vmem [shape: f32[8,128], index: 1, kind: input, shape index: {}]
  %s2 = inlined_call_operand.hbm [shape: f32[1], index: 2, kind: output, shape index: {}]
  %s3 = sld [smem:[#allocation0]]
  $region18: #{tpu_custom_call.1} parent=0
    _
  %s5 = ssub.s32 1, %s3
  %s6 = scalar_select 0, %s5, %s3
  $region1: #{tpu_custom_call.1} parent=0
    #allocation2 [shape = 'u8[512]{0}', space=smem, size = 0x200, scoped, tag = 'output window, operand 0, single buffered']
    #allocation3 [shape = 's32[1]{0}', space=sflag, size = 0x4, scoped, tag = 'scoped memory for tpu_custom_call.1']
    %7 = vsyncpa [#allocation3], 0
    // Predicated region
    $region2: #{tpu_custom_call.1} parent=1 // pred_check
      _
    $region3: #{tpu_custom_call.1} parent=1 // pred_check_branch
      %9 = sbr.rel (0) target = $region5
    $region4: #{tpu_custom_call.1} parent=1 // pred_region
      _
    $region5: #{tpu_custom_call.1} parent=1 // pred_fallthru
      _
    // Predicated region
    $region6: #{tpu_custom_call.1} parent=1 // pred_check
      _
    $region7: #{tpu_custom_call.1} parent=1 // pred_check_branch
      %11 = sbr.rel (0) target = $region9
    $region8: #{tpu_custom_call.1} parent=1 // pred_region
      _
    $region9: #{tpu_custom_call.1} parent=1 // pred_fallthru
      _
    %v12 = vld [vmem:[%s1] sm:$0xff]
    %v13 = vld [vmem:[%s0] sm:$0xff]
    %v14 = vld [vmem:[%s0 + $0x8] sm:$0xff]
    %v15 = vld [vmem:[%s0 + $0x10] sm:$0xff]
    %v16 = vlaneseq
    %v17 = vand.u32 %v16, 127
    %18 = vset.pattern.permute.xlu0 0
    %19 = vperm.xlu0 %18, %v13
    %v20 = vpop.permute.xlu0 %19
    %21 = vset.pattern.permute.xlu0 0
    %22 = vperm.xlu0 %21, %v14
    %v23 = vpop.permute.xlu0 %22
    %24 = vset.pattern.permute.xlu0 0
    %25 = vperm.xlu0 %24, %v15
    %v26 = vpop.permute.xlu0 %25
    %vm27 = vcmp.eq.s32.totalorder %v17, %v20
    %vm28 = vcmp.eq.s32.totalorder %v17, %v23
    %vm29 = vcmp.eq.s32.totalorder %v17, %v26
    %v30 = vsel %vm27, 1, 0
    %v31 = vsel %vm28, 1, 0
    %v32 = vsel %vm29, 1, 0
    %v33 = vcvt.s32.f32 %v30
    %v34 = vcvt.s32.f32 %v31
    %v35 = vcvt.s32.f32 %v32
    %36 = vset.pattern.permute.xlu0 1
    %37 = vperm.xlu0 %36, %v13
    %v38 = vpop.permute.xlu0 %37
    %39 = vset.pattern.permute.xlu0 1
    %40 = vperm.xlu0 %39, %v14
    %v41 = vpop.permute.xlu0 %40
    %42 = vset.pattern.permute.xlu0 1
    %43 = vperm.xlu0 %42, %v15
    %v44 = vpop.permute.xlu0 %43
    %vm45 = vcmp.eq.s32.totalorder %v17, %v38
    %vm46 = vcmp.eq.s32.totalorder %v17, %v41
    %vm47 = vcmp.eq.s32.totalorder %v17, %v44
    %v48 = vsel %vm45, 1, 0
    %v49 = vsel %vm46, 1, 0
    %v50 = vsel %vm47, 1, 0
    %v51 = vcvt.s32.f32 %v48
    %v52 = vcvt.s32.f32 %v49
    %v53 = vcvt.s32.f32 %v50
    %54 = vset.pattern.permute.xlu0 2
    %55 = vperm.xlu0 %54, %v13
    %v56 = vpop.permute.xlu0 %55
    %57 = vset.pattern.permute.xlu0 2
    %58 = vperm.xlu0 %57, %v14
    %v59 = vpop.permute.xlu0 %58
    %60 = vset.pattern.permute.xlu0 2
    %61 = vperm.xlu0 %60, %v15
    %v62 = vpop.permute.xlu0 %61
    %vm63 = vcmp.eq.s32.totalorder %v17, %v56
    %vm64 = vcmp.eq.s32.totalorder %v17, %v59
    %vm65 = vcmp.eq.s32.totalorder %v17, %v62
    %v66 = vsel %vm63, 1, 0
    %v67 = vsel %vm64, 1, 0
    %v68 = vsel %vm65, 1, 0
    %v69 = vcvt.s32.f32 %v66
    %v70 = vcvt.s32.f32 %v67
    %v71 = vcvt.s32.f32 %v68
    %vm72 = vcmask 64512
    %v74 = vsel %vm72, %v33, 0
    %v77 = vsel %vm72, %v34, 0
    %v80 = vsel %vm72, %v35, 0
    %82 = vmatprep.subr.mxu0 0.0
    %83 = vmatpush1.msra.mxu0 %v12
    %84 = vmatprep.subr.mxu0 0.0
    %85 = vmatpush1.msra.mxu0 0.0
    %86 = vmatprep.subr.mxu0 0.0
    %87 = vmatpush1.msra.mxu0 0.0
    %88 = vmatprep.subr.mxu0 0.0
    %89 = vmatpush1.msra.mxu0 0.0
    %90 = vmatprep.subr.mxu0 0.0
    %91 = vmatpush1.msra.mxu0 0.0
    %92 = vmatprep.subr.mxu0 0.0
    %93 = vmatpush1.msra.mxu0 0.0
    %94 = vmatprep.subr.mxu0 0.0
    %95 = vmatpush1.msra.mxu0 0.0
    %96 = vmatprep.subr.mxu0 0.0
    %97 = vmatpush1.msra.mxu0 0.0
    %98 = vmatprep.subr.mxu0 0.0
    %99 = vmatpush1.msra.mxu0 0.0
    %100 = vmatprep.subr.mxu0 0.0
    %101 = vmatpush1.msra.mxu0 0.0
    %102 = vmatprep.subr.mxu0 0.0
    %103 = vmatpush1.msra.mxu0 0.0
    %104 = vmatprep.subr.mxu0 0.0
    %105 = vmatpush1.msra.mxu0 0.0
    %106 = vmatprep.subr.mxu0 0.0
    %107 = vmatpush1.msra.mxu0 0.0
    %108 = vmatprep.subr.mxu0 0.0
    %109 = vmatpush1.msra.mxu0 0.0
    %110 = vmatprep.subr.mxu0 0.0
    %111 = vmatpush1.msra.mxu0 0.0
    %112 = vmatprep.subr.mxu0 0.0
    %113 = vmatpush1.msra.mxu0 0.0
    %114 = vmatprep.subr.mxu0 0.0
    %115 = vmatpush1.msra.mxu0 0.0
    %116 = vmatprep.subr.mxu0 0.0
    %117 = vmatpush1.msra.mxu0 0.0
    %118 = vmatprep.subr.mxu0 0.0
    %119 = vmatpush1.msra.mxu0 0.0
    %120 = vmatprep.subr.mxu0 0.0
    %121 = vmatpush1.msra.mxu0 0.0
    %122 = vmatprep.subr.mxu0 0.0
    %123 = vmatpush1.msra.mxu0 0.0
    %124 = vmatprep.subr.mxu0 0.0
    %125 = vmatpush1.msra.mxu0 0.0
    %126 = vmatprep.subr.mxu0 0.0
    %127 = vmatpush1.msra.mxu0 0.0
    %128 = vmatprep.subr.mxu0 0.0
    %129 = vmatpush1.msra.mxu0 0.0
    %130 = vmatprep.subr.mxu0 0.0
    %131 = vmatpush1.msra.mxu0 0.0
    %132 = vmatprep.subr.mxu0 0.0
    %133 = vmatpush1.msra.mxu0 0.0
    %134 = vmatprep.subr.mxu0 0.0
    %135 = vmatpush1.msra.mxu0 0.0
    %136 = vmatprep.subr.mxu0 0.0
    %137 = vmatpush1.msra.mxu0 0.0
    %138 = vmatprep.subr.mxu0 0.0
    %139 = vmatpush1.msra.mxu0 0.0
    %140 = vmatprep.subr.mxu0 0.0
    %141 = vmatpush1.msra.mxu0 0.0
    %142 = vmatprep.subr.mxu0 0.0
    %143 = vmatpush1.msra.mxu0 0.0
    %144 = vmatprep.subr.mxu0 0.0
    %145 = vmatpush1.msra.mxu0 0.0
    %146 = vmatprep.mubr.f32.mxu0 0.0
    %147 = vmatmul.mubr.f32.gmra.mrb[0].mxu0 %v74
    %v148 = vpop.f32.mrb[0].mxu0
    %v149 = vadd.f32 0.0, %v148
    %v150 = vpop.f32.mrb[0].mxu0
    %151 = vmatprep.mubr.f32.mxu0 0.0
    %152 = vmatmul.mubr.f32.gmra.mrb[0].mxu0 %v77
    %v153 = vpop.f32.mrb[0].mxu0
    %v154 = vadd.f32 0.0, %v153
    %v155 = vpop.f32.mrb[0].mxu0
    %156 = vmatprep.mubr.f32.mxu0 0.0
    %157 = vmatmul.mubr.f32.gmra.mrb[0].mxu0 %v80
    %v158 = vpop.f32.mrb[0].mxu0
    %v159 = vadd.f32 0.0, %v158
    %v160 = vpop.f32.mrb[0].mxu0
    %161 = vdwg.mxu0
    %v163 = vsel %vm72, %v51, 0
    %v166 = vsel %vm72, %v52, 0
    %v169 = vsel %vm72, %v53, 0
    %171 = vmatprep.subr.mxu0 0.0
    %172 = vmatpush1.msra.mxu0 %v12
    %173 = vmatprep.subr.mxu0 0.0
    %174 = vmatpush1.msra.mxu0 0.0
    %175 = vmatprep.subr.mxu0 0.0
    %176 = vmatpush1.msra.mxu0 0.0
    %177 = vmatprep.subr.mxu0 0.0
    %178 = vmatpush1.msra.mxu0 0.0
    %179 = vmatprep.subr.mxu0 0.0
    %180 = vmatpush1.msra.mxu0 0.0
    %181 = vmatprep.subr.mxu0 0.0
    %182 = vmatpush1.msra.mxu0 0.0
    %183 = vmatprep.subr.mxu0 0.0
    %184 = vmatpush1.msra.mxu0 0.0
    %185 = vmatprep.subr.mxu0 0.0
    %186 = vmatpush1.msra.mxu0 0.0
    %187 = vmatprep.subr.mxu0 0.0
    %188 = vmatpush1.msra.mxu0 0.0
    %189 = vmatprep.subr.mxu0 0.0
    %190 = vmatpush1.msra.mxu0 0.0
    %191 = vmatprep.subr.mxu0 0.0
    %192 = vmatpush1.msra.mxu0 0.0
    %193 = vmatprep.subr.mxu0 0.0
    %194 = vmatpush1.msra.mxu0 0.0
    %195 = vmatprep.subr.mxu0 0.0
    %196 = vmatpush1.msra.mxu0 0.0
    %197 = vmatprep.subr.mxu0 0.0
    %198 = vmatpush1.msra.mxu0 0.0
    %199 = vmatprep.subr.mxu0 0.0
    %200 = vmatpush1.msra.mxu0 0.0
    %201 = vmatprep.subr.mxu0 0.0
    %202 = vmatpush1.msra.mxu0 0.0
    %203 = vmatprep.subr.mxu0 0.0
    %204 = vmatpush1.msra.mxu0 0.0
    %205 = vmatprep.subr.mxu0 0.0
    %206 = vmatpush1.msra.mxu0 0.0
    %207 = vmatprep.subr.mxu0 0.0
    %208 = vmatpush1.msra.mxu0 0.0
    %209 = vmatprep.subr.mxu0 0.0
    %210 = vmatpush1.msra.mxu0 0.0
    %211 = vmatprep.subr.mxu0 0.0
    %212 = vmatpush1.msra.mxu0 0.0
    %213 = vmatprep.subr.mxu0 0.0
    %214 = vmatpush1.msra.mxu0 0.0
    %215 = vmatprep.subr.mxu0 0.0
    %216 = vmatpush1.msra.mxu0 0.0
    %217 = vmatprep.subr.mxu0 0.0
    %218 = vmatpush1.msra.mxu0 0.0
    %219 = vmatprep.subr.mxu0 0.0
    %220 = vmatpush1.msra.mxu0 0.0
    %221 = vmatprep.subr.mxu0 0.0
    %222 = vmatpush1.msra.mxu0 0.0
    %223 = vmatprep.subr.mxu0 0.0
    %224 = vmatpush1.msra.mxu0 0.0
    %225 = vmatprep.subr.mxu0 0.0
    %226 = vmatpush1.msra.mxu0 0.0
    %227 = vmatprep.subr.mxu0 0.0
    %228 = vmatpush1.msra.mxu0 0.0
    %229 = vmatprep.subr.mxu0 0.0
    %230 = vmatpush1.msra.mxu0 0.0
    %231 = vmatprep.subr.mxu0 0.0
    %232 = vmatpush1.msra.mxu0 0.0
    %233 = vmatprep.subr.mxu0 0.0
    %234 = vmatpush1.msra.mxu0 0.0
    %235 = vmatprep.mubr.f32.mxu0 0.0
    %236 = vmatmul.mubr.f32.gmra.mrb[0].mxu0 %v163
    %v237 = vpop.f32.mrb[0].mxu0
    %v238 = vadd.f32 0.0, %v237
    %v239 = vpop.f32.mrb[0].mxu0
    %240 = vmatprep.mubr.f32.mxu0 0.0
    %241 = vmatmul.mubr.f32.gmra.mrb[0].mxu0 %v166
    %v242 = vpop.f32.mrb[0].mxu0
    %v243 = vadd.f32 0.0, %v242
    %v244 = vpop.f32.mrb[0].mxu0
    %245 = vmatprep.mubr.f32.mxu0 0.0
    %246 = vmatmul.mubr.f32.gmra.mrb[0].mxu0 %v169
    %v247 = vpop.f32.mrb[0].mxu0
    %v248 = vadd.f32 0.0, %v247
    %v249 = vpop.f32.mrb[0].mxu0
    %250 = vdwg.mxu0
    %v252 = vsel %vm72, %v69, 0
    %v255 = vsel %vm72, %v70, 0
    %v258 = vsel %vm72, %v71, 0
    %260 = vmatprep.subr.mxu0 0.0
    %261 = vmatpush1.msra.mxu0 %v12
    %262 = vmatprep.subr.mxu0 0.0
    %263 = vmatpush1.msra.mxu0 0.0
    %264 = vmatprep.subr.mxu0 0.0
    %265 = vmatpush1.msra.mxu0 0.0
    %266 = vmatprep.subr.mxu0 0.0
    %267 = vmatpush1.msra.mxu0 0.0
    %268 = vmatprep.subr.mxu0 0.0
    %269 = vmatpush1.msra.mxu0 0.0
    %270 = vmatprep.subr.mxu0 0.0
    %271 = vmatpush1.msra.mxu0 0.0
    %272 = vmatprep.subr.mxu0 0.0
    %273 = vmatpush1.msra.mxu0 0.0
    %274 = vmatprep.subr.mxu0 0.0
    %275 = vmatpush1.msra.mxu0 0.0
    %276 = vmatprep.subr.mxu0 0.0
    %277 = vmatpush1.msra.mxu0 0.0
    %278 = vmatprep.subr.mxu0 0.0
    %279 = vmatpush1.msra.mxu0 0.0
    %280 = vmatprep.subr.mxu0 0.0
    %281 = vmatpush1.msra.mxu0 0.0
    %282 = vmatprep.subr.mxu0 0.0
    %283 = vmatpush1.msra.mxu0 0.0
    %284 = vmatprep.subr.mxu0 0.0
    %285 = vmatpush1.msra.mxu0 0.0
    %286 = vmatprep.subr.mxu0 0.0
    %287 = vmatpush1.msra.mxu0 0.0
    %288 = vmatprep.subr.mxu0 0.0
    %289 = vmatpush1.msra.mxu0 0.0
    %290 = vmatprep.subr.mxu0 0.0
    %291 = vmatpush1.msra.mxu0 0.0
    %292 = vmatprep.subr.mxu0 0.0
    %293 = vmatpush1.msra.mxu0 0.0
    %294 = vmatprep.subr.mxu0 0.0
    %295 = vmatpush1.msra.mxu0 0.0
    %296 = vmatprep.subr.mxu0 0.0
    %297 = vmatpush1.msra.mxu0 0.0
    %298 = vmatprep.subr.mxu0 0.0
    %299 = vmatpush1.msra.mxu0 0.0
    %300 = vmatprep.subr.mxu0 0.0
    %301 = vmatpush1.msra.mxu0 0.0
    %302 = vmatprep.subr.mxu0 0.0
    %303 = vmatpush1.msra.mxu0 0.0
    %304 = vmatprep.subr.mxu0 0.0
    %305 = vmatpush1.msra.mxu0 0.0
    %306 = vmatprep.subr.mxu0 0.0
    %307 = vmatpush1.msra.mxu0 0.0
    %308 = vmatprep.subr.mxu0 0.0
    %309 = vmatpush1.msra.mxu0 0.0
    %310 = vmatprep.subr.mxu0 0.0
    %311 = vmatpush1.msra.mxu0 0.0
    %312 = vmatprep.subr.mxu0 0.0
    %313 = vmatpush1.msra.mxu0 0.0
    %314 = vmatprep.subr.mxu0 0.0
    %315 = vmatpush1.msra.mxu0 0.0
    %316 = vmatprep.subr.mxu0 0.0
    %317 = vmatpush1.msra.mxu0 0.0
    %318 = vmatprep.subr.mxu0 0.0
    %319 = vmatpush1.msra.mxu0 0.0
    %320 = vmatprep.subr.mxu0 0.0
    %321 = vmatpush1.msra.mxu0 0.0
    %322 = vmatprep.subr.mxu0 0.0
    %323 = vmatpush1.msra.mxu0 0.0
    %324 = vmatprep.mubr.f32.mxu0 0.0
    %325 = vmatmul.mubr.f32.gmra.mrb[0].mxu0 %v252
    %v326 = vpop.f32.mrb[0].mxu0
    %v327 = vadd.f32 0.0, %v326
    %v328 = vpop.f32.mrb[0].mxu0
    %329 = vmatprep.mubr.f32.mxu0 0.0
    %330 = vmatmul.mubr.f32.gmra.mrb[0].mxu0 %v255
    %v331 = vpop.f32.mrb[0].mxu0
    %v332 = vadd.f32 0.0, %v331
    %v333 = vpop.f32.mrb[0].mxu0
    %334 = vmatprep.mubr.f32.mxu0 0.0
    %335 = vmatmul.mubr.f32.gmra.mrb[0].mxu0 %v258
    %v336 = vpop.f32.mrb[0].mxu0
    %v337 = vadd.f32 0.0, %v336
    %v338 = vpop.f32.mrb[0].mxu0
    %339 = vdwg.mxu0
    %v340 = vsub.f32 %v149, %v238
    %v341 = vsub.f32 %v154, %v243
    %v342 = vsub.f32 %v159, %v248
    %v343 = vsub.f32 %v149, %v327
    %v344 = vsub.f32 %v154, %v332
    %v345 = vsub.f32 %v159, %v337
    %v346 = vmul.f32 %v340, %v340
    %v347 = vmul.f32 %v341, %v341
    %v348 = vmul.f32 %v342, %v342
    %349 = vadd.xlane.f32.xlu0 %v346
    %v350 = vpop.xlane.xlu0 %349
    %351 = vadd.xlane.f32.xlu0 %v347
    %v352 = vpop.xlane.xlu0 %351
    %353 = vadd.xlane.f32.xlu0 %v348
    %v354 = vpop.xlane.xlu0 %353
    %v355 = vmul.f32 %v343, %v343
    %v356 = vmul.f32 %v344, %v344
    %v357 = vmul.f32 %v345, %v345
    %358 = vadd.xlane.f32.xlu0 %v355
    %v359 = vpop.xlane.xlu0 %358
    %360 = vadd.xlane.f32.xlu0 %v356
    %v361 = vpop.xlane.xlu0 %360
    %362 = vadd.xlane.f32.xlu0 %v357
    %v363 = vpop.xlane.xlu0 %362
    %v364 = vsub.f32 %v350, %v359
    %v365 = vsub.f32 %v352, %v361
    %v366 = vsub.f32 %v354, %v363
    %v367 = vmax.f32 %v364, 0.0
    %v368 = vmax.f32 %v365, 0.0
    %v369 = vmax.f32 %v366, 0.0
    %v370 = vand.u32 2147483647, %v364
    %v371 = vand.u32 2147483647, %v365
    %v372 = vand.u32 2147483647, %v366
    %v373 = vsub.f32 0.0, %v370
    %v374 = vsub.f32 0.0, %v371
    %v375 = vsub.f32 0.0, %v372
    %v376 = vmul.f32 %v373, 1.442695
    %v377 = vpow.pop %v376
    %v378 = vmul.f32 %v374, 1.442695
    %v379 = vpow.pop %v378
    %v380 = vmul.f32 %v375, 1.442695
    %v381 = vpow.pop %v380
    %v382 = vadd.f32 %v377, 1.0
    %v383 = vadd.f32 %v379, 1.0
    %v384 = vadd.f32 %v381, 1.0
    %v385 = vlog2.pop %v382
    %v386 = vmul.f32 %v385, 0.6931472
    %v387 = vlog2.pop %v383
    %v388 = vmul.f32 %v387, 0.6931472
    %v389 = vlog2.pop %v384
    %v390 = vmul.f32 %v389, 0.6931472
    %v391 = vadd.f32 %v367, %v386
    %v392 = vadd.f32 %v368, %v388
    %v393 = vadd.f32 %v369, %v390
    %vm394 = vcmp.ge.s32.totalorder %v13, 0
    %vm395 = vcmp.ge.s32.totalorder %v14, 0
    %vm396 = vcmp.ge.s32.totalorder %v15, 0
    %v397 = vsel %vm394, 1, 0
    %v398 = vsel %vm395, 1, 0
    %v399 = vsel %vm396, 1, 0
    %v400 = vcvt.s32.f32 %v397
    %v401 = vcvt.s32.f32 %v398
    %v402 = vcvt.s32.f32 %v399
    %v403 = vmul.f32 %v391, %v400
    %v404 = vmul.f32 %v392, %v401
    %v405 = vmul.f32 %v393, %v402
    %vm406 = vcmask 7168
    %v407 = vsel %vm406, %v400, 0.0
    %v408 = vsel %vm406, %v401, 0.0
    %v409 = vadd.f32 %v407, %v408
    %v410 = vsel %vm406, %v402, 0.0
    %v411 = vadd.f32 %v409, %v410
    %412 = vadd.xlane.f32.xlu0 %v411
    %v413 = vpop.xlane.xlu0 %412
    %v414 = vrot.slane %v413, 4
    %v415 = vadd.f32 %v413, %v414
    %v416 = vrot.slane %v415, 2
    %v417 = vadd.f32 %v415, %v416
    %v418 = vrot.slane %v417, 1
    %v419 = vadd.f32 %v417, %v418
    %s420 = vtos %v419
    %v421 = vsel %vm406, %v403, 0.0
    %v422 = vsel %vm406, %v404, 0.0
    %v423 = vadd.f32 %v421, %v422
    %v424 = vsel %vm406, %v405, 0.0
    %v425 = vadd.f32 %v423, %v424
    %426 = vadd.xlane.f32.xlu0 %v425
    %v427 = vpop.xlane.xlu0 %426
    %v428 = vrot.slane %v427, 4
    %v429 = vadd.f32 %v427, %v428
    %v430 = vrot.slane %v429, 2
    %v431 = vadd.f32 %v429, %v430
    %v432 = vrot.slane %v431, 1
    %v433 = vadd.f32 %v431, %v432
    %s434 = vtos %v433
    %v435 = vstv %s420
    %v436 = vrcp.pop %v435
    %s437 = vtos %v436
    %s438 = smul.f32 %s434, %s437
    %s439 = scalar_lea.smem [#allocation2], 0
    %440 = sst [smem:[%s439]] %s438
    // Predicated region
    $region10: #{tpu_custom_call.1} parent=1 // pred_check
      _
    $region11: #{tpu_custom_call.1} parent=1 // pred_check_branch
      %442 = sbr.rel (0) target = $region13
    $region12: #{tpu_custom_call.1} parent=1 // pred_region
      %s444 = ssub.s32 16, 16
      %445 = vsyncadd [#allocation3], %s444
      %448 = dma.smem_to_hbm [#allocation2], 16, %s2, [#allocation3]
    $region13: #{tpu_custom_call.1} parent=1 // pred_fallthru
      _
    // Predicated region
    $region14: #{tpu_custom_call.1} parent=1 // pred_check
      _
    $region15: #{tpu_custom_call.1} parent=1 // pred_check_branch
      %450 = sbr.rel (0) target = $region17
    $region16: #{tpu_custom_call.1} parent=1 // pred_region
      %451 = dma.done [#allocation3], 16
    $region17: #{tpu_custom_call.1} parent=1 // pred_fallthru
      _
    %452 = sfence
    %453 = vsyncpa [#allocation3], 1

</llo_original>
